<compile_context>
chip_gen: v7x
topology: tpu7x:2x2x1
jax: 0.10.0
libtpu: 0.0.40
codegen_flags: <defaults>
</compile_context>

<pallas_src>
import functools

import jax
import jax.numpy as jnp
from jax.experimental import pallas as pl
from jax.experimental.pallas import tpu as pltpu

GAMMA = 1.5
ALPHA = 0.25
LANES = 128
ACC_ROWS = 8                 # vreg-shaped partial-sum accumulator per core
TARGET_BLOCK_ROWS = 2048     # 1 MiB f32 per input block; 4 MiB total double-buffered
NUM_PARALLEL = 2             # leading 'parallel' grid axis (2 TCs on v7x; no-op on v5e/v6e)
PAD_LOGIT = -100.0           # softplus(-100)~0 and (1-p_t)**1.5 == 0 in f32 -> loss exactly 0


def _focal_loss_kernel(pred_ref, true_ref, acc_ref, *,
                       gamma, alpha, rows, block_rows,
                       steps_per_core, total_blocks, lanes):
    c = pl.program_id(0)           # parallel (per-core) axis
    j = pl.program_id(1)           # arbitrary (streaming / reduction) axis
    g = c * steps_per_core + j     # global block index (may overrun total_blocks)

    @pl.when(j == 0)
    def _():
        acc_ref[...] = jnp.zeros_like(acc_ref)

    x = pred_ref[...].astype(jnp.float32)   # logits
    z = true_ref[...].astype(jnp.float32)   # targets in [0, 1]

    # One shared exp(-|x|) feeds both the numerically-stable BCE and the sigmoid.
    e = jnp.exp(-jnp.abs(x))                               # EUP: exp
    bce = jnp.maximum(x, 0.0) - x * z + jnp.log1p(e)       # EUP: log1p
    p = jnp.where(x >= 0.0, 1.0, e) / (1.0 + e)            # sigmoid(x) without a 2nd exp

    p_t = z * p + (1.0 - z) * (1.0 - p)
    alpha_factor = z * alpha + (1.0 - z) * (1.0 - alpha)
    t = 1.0 - p_t
    if gamma == 1.5:
        mod = t * jnp.sqrt(t)        # t**1.5 without pow's exp(gamma*log(t)) path
    elif gamma == 2.0:
        mod = t * t
    else:
        mod = t ** gamma
    loss = bce * alpha_factor * mod

    # Only the final (possibly partial) and any overrun block need masking.
    needs_mask = g >= total_blocks - 1

    @pl.when(jnp.logical_not(needs_mask))
    def _():
        acc_ref[...] += loss.reshape(-1, ACC_ROWS, lanes).sum(axis=0)

    @pl.when(needs_mask)
    def _():
        row = jax.lax.broadcasted_iota(jnp.int32, loss.shape, 0)
        valid = (g * block_rows + row) < rows
        masked = jnp.where(valid, loss, 0.0)
        acc_ref[...] += masked.reshape(-1, ACC_ROWS, lanes).sum(axis=0)


def focal_loss(pred, true, gamma=GAMMA, alpha=ALPHA):
    """Pallas TPU implementation of FocalLoss(nn.BCEWithLogitsLoss()) forward (mean)."""
    assert pred.shape == true.shape
    n = pred.size

    pred_flat = pred.reshape(-1)
    true_flat = true.reshape(-1)

    # Pad only the ragged tail needed for a lane/sublane-dense (rows, 128) view.
    # Pad values give *exactly* zero focal loss, so no extra masking is required for them.
    n_pad = max(pl.cdiv(n, LANES) * LANES, ACC_ROWS * LANES)
    if n_pad != n:
        pred_flat = jnp.pad(pred_flat, (0, n_pad - n), constant_values=PAD_LOGIT)
        true_flat = jnp.pad(true_flat, (0, n_pad - n), constant_values=0)

    rows = n_pad // LANES                      # >= 8 by construction
    pred2 = pred_flat.reshape(rows, LANES)
    true2 = true_flat.reshape(rows, LANES)

    block_rows = min(TARGET_BLOCK_ROWS, (rows // 8) * 8)   # multiple of 8, <= rows
    total_blocks = pl.cdiv(rows, block_rows)
    steps_per_core = pl.cdiv(total_blocks, NUM_PARALLEL)

    def in_map(c, j):
        # Clamp so overrun steps on the second core stay in bounds (their contribution
        # is zeroed by the row mask in-kernel).
        return (jnp.minimum(c * steps_per_core + j, total_blocks - 1), 0)

    kernel = functools.partial(
        _focal_loss_kernel,
        gamma=gamma, alpha=alpha, rows=rows, block_rows=block_rows,
        steps_per_core=steps_per_core, total_blocks=total_blocks, lanes=LANES)

    partials = pl.pallas_call(
        kernel,
        out_shape=jax.ShapeDtypeStruct((NUM_PARALLEL * ACC_ROWS, LANES), jnp.float32),
        grid=(NUM_PARALLEL, steps_per_core),
        in_specs=[
            pl.BlockSpec((block_rows, LANES), in_map),
            pl.BlockSpec((block_rows, LANES), in_map),
        ],
        # Per-core resident accumulator block: same block across the 'arbitrary' axis.
        out_specs=pl.BlockSpec((ACC_ROWS, LANES), lambda c, j: (c, 0)),
        compiler_params=pltpu.CompilerParams(
            dimension_semantics=("parallel", "arbitrary")),
    )(pred2, true2)

    # reduction='mean' (inherited from the wrapped BCEWithLogitsLoss default).
    return jnp.sum(partials) / jnp.float32(n)


def _focal_loss_ref(pred, true, gamma=GAMMA, alpha=ALPHA):
    """Pure-JAX reference mirroring the PyTorch module (BCEWithLogitsLoss + focal, mean)."""
    x = pred.astype(jnp.float32)
    z = true.astype(jnp.float32)
    bce = jnp.maximum(x, 0.0) - x * z + jnp.log1p(jnp.exp(-jnp.abs(x)))
    p = jax.nn.sigmoid(x)
    p_t = z * p + (1.0 - z) * (1.0 - p)
    alpha_factor = z * alpha + (1.0 - z) * (1.0 - alpha)
    modulating_factor = (1.0 - p_t) ** gamma
    return jnp.mean(bce * alpha_factor * modulating_factor)


if __name__ == "__main__":
    key = jax.random.PRNGKey(0)
    k1, k2 = jax.random.split(key)

    # NCHW, matching PyTorch convention for a detection-head logit map.
    pred = jax.random.normal(k1, (2, 4, 16, 16), dtype=jnp.float32) * 2.0
    true = jax.random.bernoulli(k2, p=0.3, shape=(2, 4, 16, 16)).astype(jnp.float32)

    out = jax.block_until_ready(focal_loss(pred, true))
    ref = jax.block_until_ready(_focal_loss_ref(pred, true))

    assert jnp.allclose(out, ref, rtol=1e-5, atol=1e-6), (out, ref)
    print("KERNEL_OK")
</pallas_src>

<mosaic_0001>
module attributes {stable_mosaic.version = 11 : i64} {
  func.func @_focal_loss_kernel(%arg0: i32, %arg1: i32, %arg2: memref<16x128xf32, #tpu.memory_space<vmem>>, %arg3: memref<16x128xf32, #tpu.memory_space<vmem>>, %arg4: memref<8x128xf32, #tpu.memory_space<vmem>>) attributes {dimension_semantics = [#tpu.dimension_semantics<parallel>, #tpu.dimension_semantics<arbitrary>], iteration_bounds = array<i64: 2, 1>, scalar_prefetch = 0 : i64, scratch_operands = 0 : i64, tpu.core_type = #tpu.core_type<tc>, window_params = [{transform_indices = @transform_0, window_bounds = array<i64: 16, 128>}, {transform_indices = @transform_1, window_bounds = array<i64: 16, 128>}, {transform_indices = @transform_2, window_bounds = array<i64: 8, 128>}]} {
    %c1_i32 = arith.constant 1 : i32
    %0 = arith.muli %arg0, %c1_i32 : i32
    %1 = arith.addi %0, %arg1 : i32
    %c0_i32 = arith.constant 0 : i32
    %2 = arith.cmpi eq, %arg1, %c0_i32 : i32
    %3 = arith.extui %2 : i1 to i32
    %c0_i32_0 = arith.constant 0 : i32
    %4 = arith.cmpi ne, %3, %c0_i32_0 : i32
    scf.if %4 {
      %cst_17 = arith.constant 0.000000e+00 : f32
      %50 = vector.broadcast %cst_17 : f32 to vector<8x128xf32>
      %c0_18 = arith.constant 0 : index
      %c0_19 = arith.constant 0 : index
      %51 = vector.load %arg4[%c0_18, %c0_19] : memref<8x128xf32, #tpu.memory_space<vmem>>, vector<8x128xf32>
      tpu.vector_store %arg4[%c0_18, %c0_19], %50 {strides = array<i32>} : memref<8x128xf32, #tpu.memory_space<vmem>>, vector<8x128xf32>,
    } else {
    }
    %c0 = arith.constant 0 : index
    %c0_1 = arith.constant 0 : index
    %5 = vector.load %arg2[%c0, %c0_1] : memref<16x128xf32, #tpu.memory_space<vmem>>, vector<16x128xf32>
    %c0_2 = arith.constant 0 : index
    %c0_3 = arith.constant 0 : index
    %6 = vector.load %arg3[%c0_2, %c0_3] : memref<16x128xf32, #tpu.memory_space<vmem>>, vector<16x128xf32>
    %7 = math.absf %5 : vector<16x128xf32>
    %cst = arith.constant 0.000000e+00 : f32
    %8 = vector.broadcast %cst : f32 to vector<16x128xf32>
    %9 = arith.subf %8, %7 : vector<16x128xf32>
    %10 = math.exp %9 : vector<16x128xf32>
    %cst_4 = arith.constant 0.000000e+00 : f32
    %11 = vector.broadcast %cst_4 : f32 to vector<16x128xf32>
    %12 = arith.maximumf %5, %11 : vector<16x128xf32>
    %13 = arith.mulf %5, %6 : vector<16x128xf32>
    %14 = arith.subf %12, %13 : vector<16x128xf32>
    %15 = math.log1p %10 : vector<16x128xf32>
    %16 = arith.addf %14, %15 : vector<16x128xf32>
    %cst_5 = arith.constant 0.000000e+00 : f32
    %17 = vector.broadcast %cst_5 : f32 to vector<16x128xf32>
    %18 = arith.cmpf oge, %5, %17 : vector<16x128xf32>
    %cst_6 = arith.constant 1.000000e+00 : f32
    %19 = vector.broadcast %cst_6 : f32 to vector<16x128xf32>
    %20 = arith.select %18, %19, %10 : vector<16x128xi1>, vector<16x128xf32>
    %cst_7 = arith.constant 1.000000e+00 : f32
    %21 = vector.broadcast %cst_7 : f32 to vector<16x128xf32>
    %22 = arith.addf %21, %10 : vector<16x128xf32>
    %23 = arith.divf %20, %22 : vector<16x128xf32>
    %24 = arith.mulf %6, %23 : vector<16x128xf32>
    %cst_8 = arith.constant 1.000000e+00 : f32
    %25 = vector.broadcast %cst_8 : f32 to vector<16x128xf32>
    %26 = arith.subf %25, %6 : vector<16x128xf32>
    %cst_9 = arith.constant 1.000000e+00 : f32
    %27 = vector.broadcast %cst_9 : f32 to vector<16x128xf32>
    %28 = arith.subf %27, %23 : vector<16x128xf32>
    %29 = arith.mulf %26, %28 : vector<16x128xf32>
    %30 = arith.addf %24, %29 : vector<16x128xf32>
    %cst_10 = arith.constant 2.500000e-01 : f32
    %31 = vector.broadcast %cst_10 : f32 to vector<16x128xf32>
    %32 = arith.mulf %6, %31 : vector<16x128xf32>
    %cst_11 = arith.constant 1.000000e+00 : f32
    %33 = vector.broadcast %cst_11 : f32 to vector<16x128xf32>
    %34 = arith.subf %33, %6 : vector<16x128xf32>
    %cst_12 = arith.constant 7.500000e-01 : f32
    %35 = vector.broadcast %cst_12 : f32 to vector<16x128xf32>
    %36 = arith.mulf %34, %35 : vector<16x128xf32>
    %37 = arith.addf %32, %36 : vector<16x128xf32>
    %cst_13 = arith.constant 1.000000e+00 : f32
    %38 = vector.broadcast %cst_13 : f32 to vector<16x128xf32>
    %39 = arith.subf %38, %30 : vector<16x128xf32>
    %40 = math.sqrt %39 : vector<16x128xf32>
    %41 = arith.mulf %39, %40 : vector<16x128xf32>
    %42 = arith.mulf %16, %37 : vector<16x128xf32>
    %43 = arith.mulf %42, %41 : vector<16x128xf32>
    %c0_i32_14 = arith.constant 0 : i32
    %44 = arith.cmpi sge, %1, %c0_i32_14 : i32
    %true = arith.constant true
    %45 = arith.xori %44, %true : i1
    %46 = arith.extui %45 : i1 to i32
    %c0_i32_15 = arith.constant 0 : i32
    %47 = arith.cmpi ne, %46, %c0_i32_15 : i32
    scf.if %47 {
      %c0_17 = arith.constant 0 : index
      %c0_18 = arith.constant 0 : index
      %50 = vector.load %arg4[%c0_17, %c0_18] : memref<8x128xf32, #tpu.memory_space<vmem>>, vector<8x128xf32>
      %51 = vector.shape_cast %43 : vector<16x128xf32> to vector<2x8x128xf32>
      %cst_19 = arith.constant dense<0.000000e+00> : vector<8x128xf32>
      %52 = vector.multi_reduction <add>, %51, %cst_19 [0] : vector<2x8x128xf32> to vector<8x128xf32>
      %53 = arith.addf %50, %52 : vector<8x128xf32>
      %c0_20 = arith.constant 0 : index
      %c0_21 = arith.constant 0 : index
      %54 = vector.load %arg4[%c0_20, %c0_21] : memref<8x128xf32, #tpu.memory_space<vmem>>, vector<8x128xf32>
      tpu.vector_store %arg4[%c0_20, %c0_21], %53 {strides = array<i32>} : memref<8x128xf32, #tpu.memory_space<vmem>>, vector<8x128xf32>,
    } else {
    }
    %48 = arith.extui %44 : i1 to i32
    %c0_i32_16 = arith.constant 0 : i32
    %49 = arith.cmpi ne, %48, %c0_i32_16 : i32
    scf.if %49 {
      %50 = tpu.iota {dimensions = array<i32: 0>} : vector<16x128xi32>
      %c16_i32 = arith.constant 16 : i32
      %51 = arith.muli %1, %c16_i32 : i32
      %52 = vector.broadcast %51 : i32 to vector<16x128xi32>
      %53 = arith.addi %52, %50 : vector<16x128xi32>
      %c16_i32_17 = arith.constant 16 : i32
      %54 = vector.broadcast %c16_i32_17 : i32 to vector<16x128xi32>
      %55 = arith.cmpi slt, %53, %54 : vector<16x128xi32>
      %cst_18 = arith.constant 0.000000e+00 : f32
      %56 = vector.broadcast %cst_18 : f32 to vector<16x128xf32>
      %57 = arith.select %55, %43, %56 : vector<16x128xi1>, vector<16x128xf32>
      %c0_19 = arith.constant 0 : index
      %c0_20 = arith.constant 0 : index
      %58 = vector.load %arg4[%c0_19, %c0_20] : memref<8x128xf32, #tpu.memory_space<vmem>>, vector<8x128xf32>
      %59 = vector.shape_cast %57 : vector<16x128xf32> to vector<2x8x128xf32>
      %cst_21 = arith.constant dense<0.000000e+00> : vector<8x128xf32>
      %60 = vector.multi_reduction <add>, %59, %cst_21 [0] : vector<2x8x128xf32> to vector<8x128xf32>
      %61 = arith.addf %58, %60 : vector<8x128xf32>
      %c0_22 = arith.constant 0 : index
      %c0_23 = arith.constant 0 : index
      %62 = vector.load %arg4[%c0_22, %c0_23] : memref<8x128xf32, #tpu.memory_space<vmem>>, vector<8x128xf32>
      tpu.vector_store %arg4[%c0_22, %c0_23], %61 {strides = array<i32>} : memref<8x128xf32, #tpu.memory_space<vmem>>, vector<8x128xf32>,
    } else {
    }
    return
  }
  func.func @transform_0(%arg0: i32, %arg1: i32) -> (i32, i32) {
    %c1_i32 = arith.constant 1 : i32
    %0 = arith.muli %arg0, %c1_i32 : i32
    %1 = arith.addi %0, %arg1 : i32
    %c0_i32 = arith.constant 0 : i32
    %2 = arith.minsi %1, %c0_i32 : i32
    %c0_i32_0 = arith.constant 0 : i32
    %c0_i32_1 = arith.constant 0 : i32
    return %2, %c0_i32_0 : i32, i32
  }
  func.func @transform_1(%arg0: i32, %arg1: i32) -> (i32, i32) {
    %c1_i32 = arith.constant 1 : i32
    %0 = arith.muli %arg0, %c1_i32 : i32
    %1 = arith.addi %0, %arg1 : i32
    %c0_i32 = arith.constant 0 : i32
    %2 = arith.minsi %1, %c0_i32 : i32
    %c0_i32_0 = arith.constant 0 : i32
    %c0_i32_1 = arith.constant 0 : i32
    return %2, %c0_i32_0 : i32, i32
  }
  func.func @transform_2(%arg0: i32, %arg1: i32) -> (i32, i32) {
    %c0_i32 = arith.constant 0 : i32
    %c0_i32_0 = arith.constant 0 : i32
    return %arg0, %c0_i32 : i32, i32
  }
}

</mosaic_0001>

<llo_original>
// kernel: tpu_custom_call.1
$region0: #{tpu_custom_call.1}
  #allocation0 [shape = 'u32[]', space=smem, size = 0x4, offset = 0x4, fixed_abs, tag = 'smem constant byte address 0x4 - core index']
  #allocation1 [shape = 'u32[144,128]{1,0:T(1,128)}', space=vmem, size = 0x12000, scoped, tag = 'internal scratch']
  %s0 = inlined_call_operand.hbm [shape: f32[16,128], index: 0, kind: input, shape index: {}]
  %s1 = inlined_call_operand.hbm [shape: f32[16,128], index: 1, kind: input, shape index: {}]
  %s2 = inlined_call_operand.hbm [shape: f32[16,128], index: 2, kind: output, shape index: {}]
  %s3 = sld [smem:[#allocation0]]
  $region61: #{tpu_custom_call.1} parent=0
    _
  %s5 = ssub.s32 1, %s3
  %s6 = scalar_select 0, %s5, %s3
  $region1: #{tpu_custom_call.1} parent=0
    #allocation2 [shape = 'u8[16384]{0}', space=vmem, size = 0x4000, scoped, tag = 'input window, operand 0']
    #allocation3 [shape = 's32[2]{0}', space=sflag, size = 0x8, scoped, tag = 'scoped memory for tpu_custom_call.1']
    #allocation4 [shape = 's32[2]{0}', space=sflag, size = 0x8, scoped, tag = 'scoped memory for tpu_custom_call.1']
    #allocation5 [shape = 'u8[16384]{0}', space=vmem, size = 0x4000, scoped, tag = 'input window, operand 1']
    #allocation6 [shape = 's32[2]{0}', space=sflag, size = 0x8, scoped, tag = 'scoped memory for tpu_custom_call.1']
    #allocation7 [shape = 'u8[8192]{0}', space=vmem, size = 0x2000, scoped, tag = 'output window, operand 0']
    %7 = vsyncpa [#allocation3], 0
    %s8 = scalar_lea.sflag [#allocation3], 1
    %9 = vsyncpa %s8, 0
    %10 = vsyncpa [#allocation6], 0
    %s11 = scalar_lea.sflag [#allocation6], 1
    %12 = vsyncpa %s11, 0
    %13 = vsyncpa [#allocation4], 0
    %s14 = scalar_lea.sflag [#allocation4], 1
    %15 = vsyncpa %s14, 0
    loop: start=0, step=1, limit=4
    $region2: #{tpu_custom_call.1} parent=1 // loop_pre_header
      _
    $region3: #{tpu_custom_call.1} parent=1 // loop_header
      %s17 = sphi 0, %s21
      %p18 = scmp.ge.s32.totalorder %s17, 4
      %s24 = sphi 0, %s36
      %s25 = sphi 0, %s32
      %s26 = sphi 0, %s24
      %s27 = sphi 0, %s25
      %s28 = sphi 0, %s26
      %s29 = sphi 0, %s27
      %s45 = sphi 0, %s47
      %s48 = sphi 0, %s45
      %s49 = sphi 0, %s48
      %s65 = sphi 0, %s49
      %s77 = sphi 0, %s79
      %s80 = sphi 0, %s77
      %s81 = sphi 0, %s80
      %s97 = sphi 0, %s81
      %s103 = sphi 0, %s105
      %s106 = sphi 0, %s103
      %s107 = sphi 0, %s106
      %s123 = sphi 0, %s107
    $region4: #{tpu_custom_call.1} parent=1 // loop_header_branch
      %20 = sbr.rel (%p18) target = $region8
    $region5: #{tpu_custom_call.1} parent=1 // loop_body
      %s22 = ssub.s32 %s17, 1
      %s23 = ssub.s32 %s17, 2
      %s30 = sadd.s32 1, %s25
      %p31 = scmp.ge.s32.totalorder %s30, 1
      %s32 = scalar_select %p31, 0, %s30
      %s33 = sadd.s32 1, %s24
      %s34 = scalar_select %p31, %s33, %s24
      %p35 = scmp.ge.s32.totalorder %s34, 2
      %s36 = scalar_select %p35, 0, %s34
      %s37 = sadd.s32 %s24, %s25
      %p38 = scmp.lt.s32.totalorder %s37, 0
      %s39 = scalar_select %p38, %s37, 0
      %s40 = sadd.s32 %s36, %s32
      %p41 = scmp.lt.s32.totalorder %s40, 0
      %s42 = scalar_select %p41, %s40, 0
      %s43 = ssub.s32 %s39, %s42
      %p44 = scmp.eq.s32.totalorder %s43, 0
      %s46 = sadd.s32 %s45, 1
      %s47 = scalar_select %p44, %s45, %s46
      %p50 = pneg %p44
      %p51 = scmp.eq.s32.totalorder %s17, 1
      %p52 = por %p50, %p51
      %p53 = scmp.ne.s32.totalorder %s45, %s48
      %p54 = scmp.eq.s32.totalorder %s17, 0
      %p55 = por %p53, %p54
      %p56 = scmp.ne.s32.totalorder %s45, %s48
      %p57 = scmp.eq.s32.totalorder %s22, 1
      %p58 = por %p56, %p57
      %p59 = scmp.ne.s32.totalorder %s48, %s49
      %p60 = scmp.eq.s32.totalorder %s22, 0
      %p61 = por %p59, %p60
      %p62 = scmp.ne.s32.totalorder %s48, %s49
      %p63 = scmp.eq.s32.totalorder %s23, 1
      %p64 = por %p62, %p63
      %p66 = scmp.ne.s32.totalorder %s49, %s65
      %p67 = scmp.eq.s32.totalorder %s23, 0
      %p68 = por %p66, %p67
      %s69 = sadd.s32 %s24, %s25
      %p70 = scmp.lt.s32.totalorder %s69, 0
      %s71 = scalar_select %p70, %s69, 0
      %s72 = sadd.s32 %s36, %s32
      %p73 = scmp.lt.s32.totalorder %s72, 0
      %s74 = scalar_select %p73, %s72, 0
      %s75 = ssub.s32 %s71, %s74
      %p76 = scmp.eq.s32.totalorder %s75, 0
      %s78 = sadd.s32 %s77, 1
      %s79 = scalar_select %p76, %s77, %s78
      %p82 = pneg %p76
      %p83 = scmp.eq.s32.totalorder %s17, 1
      %p84 = por %p82, %p83
      %p85 = scmp.ne.s32.totalorder %s77, %s80
      %p86 = scmp.eq.s32.totalorder %s17, 0
      %p87 = por %p85, %p86
      %p88 = scmp.ne.s32.totalorder %s77, %s80
      %p89 = scmp.eq.s32.totalorder %s22, 1
      %p90 = por %p88, %p89
      %p91 = scmp.ne.s32.totalorder %s80, %s81
      %p92 = scmp.eq.s32.totalorder %s22, 0
      %p93 = por %p91, %p92
      %p94 = scmp.ne.s32.totalorder %s80, %s81
      %p95 = scmp.eq.s32.totalorder %s23, 1
      %p96 = por %p94, %p95
      %p98 = scmp.ne.s32.totalorder %s81, %s97
      %p99 = scmp.eq.s32.totalorder %s23, 0
      %p100 = por %p98, %p99
      %s101 = ssub.s32 %s24, %s36
      %p102 = scmp.eq.s32.totalorder %s101, 0
      %s104 = sadd.s32 %s103, 1
      %s105 = scalar_select %p102, %s103, %s104
      %p108 = pneg %p102
      %p109 = scmp.eq.s32.totalorder %s17, 1
      %p110 = por %p108, %p109
      %p111 = scmp.ne.s32.totalorder %s103, %s106
      %p112 = scmp.eq.s32.totalorder %s17, 0
      %p113 = por %p111, %p112
      %p114 = scmp.ne.s32.totalorder %s103, %s106
      %p115 = scmp.eq.s32.totalorder %s22, 1
      %p116 = por %p114, %p115
      %p117 = scmp.ne.s32.totalorder %s106, %s107
      %p118 = scmp.eq.s32.totalorder %s22, 0
      %p119 = por %p117, %p118
      %p120 = scmp.ne.s32.totalorder %s106, %s107
      %p121 = scmp.eq.s32.totalorder %s23, 1
      %p122 = por %p120, %p121
      %p124 = scmp.ne.s32.totalorder %s107, %s123
      %p125 = scmp.eq.s32.totalorder %s23, 0
      %p126 = por %p124, %p125
      %p127 = scmp.le.s32.totalorder 1, %s17
      %p128 = scmp.lt.s32.totalorder %s17, 3
      %p129 = pnand %p127, %p128
      %p130 = pneg %p129
      // Predicated region
      $region9: #{tpu_custom_call.1} parent=5 // pred_check
        _
      $region10: #{tpu_custom_call.1} parent=5 // pred_check_branch
        %132 = sbr.rel (%p129) target = $region12
      $region11: #{tpu_custom_call.1} parent=5 // pred_region
        %s133 = ssub.s32 %s17, 1
      $region12: #{tpu_custom_call.1} parent=5 // pred_fallthru
        _
      %p134 = scmp.lt.s32.totalorder %s17, 2
      // Predicated region
      $region13: #{tpu_custom_call.1} parent=5 // pred_check
        %p135 = pneg %p134
      $region14: #{tpu_custom_call.1} parent=5 // pred_check_branch
        %137 = sbr.rel (%p135) target = $region16
      $region15: #{tpu_custom_call.1} parent=5 // pred_region
        // Predicated region
        $region17: #{tpu_custom_call.1} parent=15 // pred_check
          %p138 = pneg %p55
        $region18: #{tpu_custom_call.1} parent=15 // pred_check_branch
          %140 = sbr.rel (%p138) target = $region20
        $region19: #{tpu_custom_call.1} parent=15 // pred_region
          %s141 = sand.u32 %s45, 1
          %s142 = scalar_lea.sflag [#allocation3], %s141
          %s143 = sand.u32 %s45, 1
          %s144 = smul.addr %s143, 16
          %s145 = scalar_lea.vmem [#allocation2], %s144
          %s146 = sadd.s32 %s24, %s25
          %p147 = scmp.lt.s32.totalorder %s146, 0
          %s148 = scalar_select %p147, %s146, 0
          %s149 = smul.u32 2, %s148
          %s151 = ssub.s32 256, 256
          %152 = vsyncadd %s142, %s151
          %s153 = smul.addr %s149, 128
          %s154 = scalar_lea.hbm %s0, %s153
          %s155 = sshll.u32 %s145, 4
          %s156 = int_to_ptr.vmem [resolvable:$true] %s155
          %161 = dma.hbm_to_vmem [thread:$0]  %s154, 256, %s156, %s142, 128, 128, 8
        $region20: #{tpu_custom_call.1} parent=15 // pred_fallthru
          _
        // Predicated region
        $region21: #{tpu_custom_call.1} parent=15 // pred_check
          %p162 = pneg %p87
        $region22: #{tpu_custom_call.1} parent=15 // pred_check_branch
          %164 = sbr.rel (%p162) target = $region24
        $region23: #{tpu_custom_call.1} parent=15 // pred_region
          %s165 = sand.u32 %s77, 1
          %s166 = scalar_lea.sflag [#allocation6], %s165
          %s167 = sand.u32 %s77, 1
          %s168 = smul.addr %s167, 16
          %s169 = scalar_lea.vmem [#allocation5], %s168
          %s170 = sadd.s32 %s24, %s25
          %p171 = scmp.lt.s32.totalorder %s170, 0
          %s172 = scalar_select %p171, %s170, 0
          %s173 = smul.u32 2, %s172
          %s175 = ssub.s32 256, 256
          %176 = vsyncadd %s166, %s175
          %s177 = smul.addr %s173, 128
          %s178 = scalar_lea.hbm %s1, %s177
          %s179 = sshll.u32 %s169, 4
          %s180 = int_to_ptr.vmem [resolvable:$true] %s179
          %185 = dma.hbm_to_vmem [thread:$0]  %s178, 256, %s180, %s166, 128, 128, 8
        $region24: #{tpu_custom_call.1} parent=15 // pred_fallthru
          _
      $region16: #{tpu_custom_call.1} parent=5 // pred_fallthru
        _
      %p186 = scmp.le.s32.totalorder 1, %s17
      %p187 = scmp.lt.s32.totalorder %s17, 3
      %p188 = pnand %p186, %p187
      %p189 = pneg %p188
      // Predicated region
      $region25: #{tpu_custom_call.1} parent=5 // pred_check
        _
      $region26: #{tpu_custom_call.1} parent=5 // pred_check_branch
        %191 = sbr.rel (%p188) target = $region28
      $region27: #{tpu_custom_call.1} parent=5 // pred_region
        %s192 = ssub.s32 %s17, 1
        %s193 = sand.u32 %s48, 1
        %s194 = scalar_lea.sflag [#allocation3], %s193
        %s195 = sand.u32 %s48, 1
        %s196 = smul.addr %s195, 16
        %s197 = scalar_lea.vmem [#allocation2], %s196
        // Predicated region
        $region29: #{tpu_custom_call.1} parent=27 // pred_check
          %p198 = pneg %p61
        $region30: #{tpu_custom_call.1} parent=27 // pred_check_branch
          %200 = sbr.rel (%p198) target = $region32
        $region31: #{tpu_custom_call.1} parent=27 // pred_region
          %201 = dma.done %s194, 256
        $region32: #{tpu_custom_call.1} parent=27 // pred_fallthru
          _
        %s202 = sand.u32 %s80, 1
        %s203 = scalar_lea.sflag [#allocation6], %s202
        %s204 = sand.u32 %s80, 1
        %s205 = smul.addr %s204, 16
        %s206 = scalar_lea.vmem [#allocation5], %s205
        // Predicated region
        $region33: #{tpu_custom_call.1} parent=27 // pred_check
          %p207 = pneg %p93
        $region34: #{tpu_custom_call.1} parent=27 // pred_check_branch
          %209 = sbr.rel (%p207) target = $region36
        $region35: #{tpu_custom_call.1} parent=27 // pred_region
          %210 = dma.done %s203, 256
        $region36: #{tpu_custom_call.1} parent=27 // pred_fallthru
          _
        %s211 = sand.u32 %s48, 1
        %s212 = scalar_lea.sflag [#allocation3], %s211
        %s213 = sand.u32 %s48, 1
        %s214 = smul.addr %s213, 16
        %s215 = scalar_lea.vmem [#allocation2], %s214
        %p216 = pneg %p61
        %p217 = pneg %p58
        %s218 = sand.u32 %s80, 1
        %s219 = scalar_lea.sflag [#allocation6], %s218
        %s220 = sand.u32 %s80, 1
        %s221 = smul.addr %s220, 16
        %s222 = scalar_lea.vmem [#allocation5], %s221
        %p223 = pneg %p93
        %p224 = pneg %p90
        %p225 = pneg %p119
        %p226 = pneg %p116
        %s227 = sand.u32 %s106, 1
        %s228 = scalar_lea.sflag [#allocation4], %s227
        %s229 = sand.u32 %s106, 1
        %s230 = smul.addr %s229, 8
        %s231 = scalar_lea.vmem [#allocation7], %s230
        %s232 = sadd.s32 %s26, %s27
        %p233 = scmp.lt.s32.totalorder %s232, 0
        %s234 = scalar_select %p233, %s232, 0
        %s235 = smul.u32 2, %s234
        %s236 = sadd.s32 %s26, %s27
        %p237 = scmp.lt.s32.totalorder %s236, 0
        %s238 = scalar_select %p237, %s236, 0
        %s239 = smul.u32 2, %s238
        %s240 = sadd.s32 %s26, %s27
        %p241 = scmp.eq.s32.totalorder %s27, 0
        // Predicated region
        $region37: #{tpu_custom_call.1} parent=27 // pred_check
          %p242 = pneg %p241
        $region38: #{tpu_custom_call.1} parent=27 // pred_check_branch
          %244 = sbr.rel (%p242) target = $region40
        $region39: #{tpu_custom_call.1} parent=27 // pred_region
          %245 = vst [vmem:[%s231] sm:$0xff] 0.0
        $region40: #{tpu_custom_call.1} parent=27 // pred_fallthru
          _
        %v246 = vld [vmem:[%s197] sm:$0xff]
        %v247 = vld [vmem:[%s197 + $0x8] sm:$0xff]
        %v248 = vld [vmem:[%s206] sm:$0xff]
        %v249 = vld [vmem:[%s206 + $0x8] sm:$0xff]
        %v250 = vand.u32 2147483647, %v246
        %v251 = vand.u32 2147483647, %v247
        %v252 = vsub.f32 0.0, %v250
        %v253 = vsub.f32 0.0, %v251
        %v254 = vmul.f32 %v252, 1.442695
        %v255 = vpow.pop %v254
        %v256 = vmul.f32 %v253, 1.442695
        %v257 = vpow.pop %v256
        %v258 = vmax.f32 %v246, 0.0
        %v259 = vmax.f32 %v247, 0.0
        %v260 = vmul.f32 %v246, %v248
        %v261 = vmul.f32 %v247, %v249
        %v262 = vsub.f32 %v258, %v260
        %v263 = vsub.f32 %v259, %v261
        %v264 = vadd.f32 %v255, 1.0
        %v265 = vlog2.pop %v264
        %v266 = vmul.f32 %v265, 0.6931472
        %v267 = vmul.f32 -0.5, %v255
        %v268 = vadd.f32 %v267, 1.0
        %v269 = vmul.f32 %v268, %v255
        %v270 = vand.u32 2147483647, %v255
        %vm271 = vcmp.lt.f32.partialorder %v270, 0.0004427343
        %v272 = vsel %vm271, %v269, %v266
        %v273 = vadd.f32 %v257, 1.0
        %v274 = vlog2.pop %v273
        %v275 = vmul.f32 %v274, 0.6931472
        %v276 = vmul.f32 -0.5, %v257
        %v277 = vadd.f32 %v276, 1.0
        %v278 = vmul.f32 %v277, %v257
        %v279 = vand.u32 2147483647, %v257
        %vm280 = vcmp.lt.f32.partialorder %v279, 0.0004427343
        %v281 = vsel %vm280, %v278, %v275
        %v282 = vadd.f32 %v262, %v272
        %v283 = vadd.f32 %v263, %v281
        %vm284 = vcmp.ge.f32.partialorder %v246, 0.0
        %vm285 = vcmp.ge.f32.partialorder %v247, 0.0
        %v286 = vsel %vm284, 1.0, %v255
        %v287 = vsel %vm285, 1.0, %v257
        %v288 = vadd.f32 %v255, 1.0
        %v289 = vadd.f32 %v257, 1.0
        %v290 = vrcp.pop %v288
        %v291 = vmul.f32 %v286, %v290
        %v292 = vrcp.pop %v289
        %v293 = vmul.f32 %v287, %v292
        %v294 = vmul.f32 %v248, %v291
        %v295 = vmul.f32 %v249, %v293
        %v296 = vsub.f32 1.0, %v248
        %v297 = vsub.f32 1.0, %v249
        %v298 = vsub.f32 1.0, %v291
        %v299 = vsub.f32 1.0, %v293
        %v300 = vmul.f32 %v296, %v298
        %v301 = vmul.f32 %v297, %v299
        %v302 = vadd.f32 %v294, %v300
        %v303 = vadd.f32 %v295, %v301
        %v304 = vmul.f32 %v248, 0.25
        %v305 = vmul.f32 %v249, 0.25
        %v306 = vmul.f32 %v296, 0.75
        %v307 = vmul.f32 %v297, 0.75
        %v308 = vadd.f32 %v304, %v306
        %v309 = vadd.f32 %v305, %v307
        %v310 = vsub.f32 1.0, %v302
        %v311 = vsub.f32 1.0, %v303
        %v312 = vrsqrt.pop %v310
        %v313 = vmul.f32 %v310, %v312
        %vm314 = vcmp.eq.f32.partialorder %v310, inf
        %v315 = vsel %vm314, %v310, %v313
        %vm316 = vcmp.eq.f32.partialorder %v310, 0.0
        %v317 = vand.u32 %v310, 2147483648
        %v318 = vsel %vm316, %v317, %v315
        %v319 = vrsqrt.pop %v311
        %v320 = vmul.f32 %v311, %v319
        %vm321 = vcmp.eq.f32.partialorder %v311, inf
        %v322 = vsel %vm321, %v311, %v320
        %vm323 = vcmp.eq.f32.partialorder %v311, 0.0
        %v324 = vand.u32 %v311, 2147483648
        %v325 = vsel %vm323, %v324, %v322
        %v326 = vmul.f32 %v310, %v318
        %v327 = vmul.f32 %v311, %v325
        %v328 = vmul.f32 %v282, %v308
        %v329 = vmul.f32 %v283, %v309
        %v330 = vmul.f32 %v328, %v326
        %v331 = vmul.f32 %v329, %v327
        %p332 = scmp.ge.s32.totalorder %s240, 0
        %p333 = scmp.lt.s32.totalorder %s240, 0
        // Predicated region
        $region41: #{tpu_custom_call.1} parent=27 // pred_check
          %p334 = pneg %p333
        $region42: #{tpu_custom_call.1} parent=27 // pred_check_branch
          %336 = sbr.rel (%p334) target = $region44
        $region43: #{tpu_custom_call.1} parent=27 // pred_region
          %v337 = vld [vmem:[%s231] sm:$0xff]
          %v338 = vadd.f32 %v330, %v331
          %v339 = vadd.f32 %v337, %v338
          %340 = vst [vmem:[%s231] sm:$0xff] %v339
        $region44: #{tpu_custom_call.1} parent=27 // pred_fallthru
          _
        // Predicated region
        $region45: #{tpu_custom_call.1} parent=27 // pred_check
          %p341 = pneg %p332
        $region46: #{tpu_custom_call.1} parent=27 // pred_check_branch
          %343 = sbr.rel (%p341) target = $region48
        $region47: #{tpu_custom_call.1} parent=27 // pred_region
          %v344 = vlaneseq
          %v345 = vshrl.u32 %v344, 7
          %v346 = vadd.s32 %v345, 8
          %s347 = smul.u32 %s240, 16
          %v348 = vstv %s347
          %v349 = vadd.s32 %v348, %v345
          %v350 = vadd.s32 %v348, %v346
          %vm351 = vcmp.lt.s32.totalorder %v349, 16
          %vm352 = vcmp.lt.s32.totalorder %v350, 16
          %v353 = vsel %vm351, %v330, 0.0
          %v354 = vsel %vm352, %v331, 0.0
          %v355 = vld [vmem:[%s231] sm:$0xff]
          %v356 = vadd.f32 %v353, %v354
          %v357 = vadd.f32 %v355, %v356
          %358 = vst [vmem:[%s231] sm:$0xff] %v357
        $region48: #{tpu_custom_call.1} parent=27 // pred_fallthru
          _
        %s359 = sand.u32 %s106, 1
        %s360 = scalar_lea.sflag [#allocation4], %s359
        %s361 = sand.u32 %s106, 1
        %s362 = smul.addr %s361, 8
        %s363 = scalar_lea.vmem [#allocation7], %s362
        // Predicated region
        $region49: #{tpu_custom_call.1} parent=27 // pred_check
          %p364 = pneg %p116
        $region50: #{tpu_custom_call.1} parent=27 // pred_check_branch
          %366 = sbr.rel (%p364) target = $region52
        $region51: #{tpu_custom_call.1} parent=27 // pred_region
          %s368 = ssub.s32 128, 128
          %369 = vsyncadd %s360, %s368
          %s370 = smul.addr %s26, 128
          %s371 = scalar_lea.hbm %s2, %s370
          %s373 = sshll.u32 %s363, 4
          %s374 = int_to_ptr.vmem [resolvable:$true] %s373
          %376 = dma.vmem_to_hbm [thread:$0]  %s374, 128, %s371, %s360
        $region52: #{tpu_custom_call.1} parent=27 // pred_fallthru
          _
      $region28: #{tpu_custom_call.1} parent=5 // pred_fallthru
        _
      %p377 = scmp.le.s32.totalorder 2, %s17
      // Predicated region
      $region53: #{tpu_custom_call.1} parent=5 // pred_check
        %p378 = pneg %p377
      $region54: #{tpu_custom_call.1} parent=5 // pred_check_branch
        %380 = sbr.rel (%p378) target = $region56
      $region55: #{tpu_custom_call.1} parent=5 // pred_region
        %s381 = ssub.s32 %s17, 2
        // Predicated region
        $region57: #{tpu_custom_call.1} parent=55 // pred_check
          %p382 = pneg %p122
        $region58: #{tpu_custom_call.1} parent=55 // pred_check_branch
          %384 = sbr.rel (%p382) target = $region60
        $region59: #{tpu_custom_call.1} parent=55 // pred_region
          %s385 = sand.u32 %s107, 1
          %s386 = scalar_lea.sflag [#allocation4], %s385
          %s387 = sand.u32 %s107, 1
          %s388 = smul.addr %s387, 8
          %s389 = scalar_lea.vmem [#allocation7], %s388
          %390 = dma.done %s386, 128
        $region60: #{tpu_custom_call.1} parent=55 // pred_fallthru
          _
      $region56: #{tpu_custom_call.1} parent=5 // pred_fallthru
        _
    $region6: #{tpu_custom_call.1} parent=1 // loop_footer
      %s21 = sadd.s32 1, %s17
    $region7: #{tpu_custom_call.1} parent=1 // loop_footer_branch
      %16 = sbr.rel target = $region3
    $region8: #{tpu_custom_call.1} parent=1 // loop_exit
      _
    %391 = vsyncpa [#allocation3], 1
    %s392 = scalar_lea.sflag [#allocation3], 1
    %393 = vsyncpa %s392, 1
    %394 = vsyncpa [#allocation6], 1
    %s395 = scalar_lea.sflag [#allocation6], 1
    %396 = vsyncpa %s395, 1
    %397 = vsyncpa [#allocation4], 1
    %s398 = scalar_lea.sflag [#allocation4], 1
    %399 = vsyncpa %s398, 1

</llo_original>
